<compile_context>
chip_gen: v7x
topology: tpu7x:2x2x1
jax: 0.10.0
libtpu: 0.0.40
codegen_flags: <defaults>
</compile_context>

<pallas_src>
import jax
import jax.numpy as jnp
from jax.experimental import pallas as pl
from jax.experimental.pallas import tpu as pltpu

TEMPERATURE = 0.07        # outer division (module default) -- folded away (scale-invariant)
NTXENT_TEMP = 0.07        # NTXentLoss temperature (hard-coded in forward)
INV_NTXENT_TEMP = 1.0 / NTXENT_TEMP
EPS_NORM = 1e-12          # F.normalize / CosineSimilarity eps
TINY_F32 = 1.1754944e-38  # torch.finfo(float32).tiny (reference formulation only)
NEG_FILL = -1e30          # large-negative fill for non-negative-pair entries

# Set True to feed the dominant (TILE_R,D)x(D,N) matmul as bf16 (f32 accumulation).
# Default False keeps near-bit-faithful f32 semantics vs. the PyTorch reference.
USE_BF16_MXU = False


def _supcon_kernel(h_ref, xnt_ref, invr_ref, invc_ref, sdiag_ref,
                   labr_ref, labc_ref, out_ref):
    # sim slab via the G-trick: sim_ij = (H_i . Xn_j) * inv_n_i * inv_n_j
    dot = jax.lax.dot_general(
        h_ref[...], xnt_ref[...], (((1,), (0,)), ((), ())),
        preferred_element_type=jnp.float32)                          # (TILE_R, N)
    # s = sim / NTXENT_TEMP  (fold 1/T into the row scale)
    s = dot * (invr_ref[...] * INV_NTXENT_TEMP) * invc_ref[...]      # (TILE_R, N)

    # positive/negative structure for this anchor-row tile (VPU only, no iota slabs)
    eq = labr_ref[...] == labc_ref[...]                              # (TILE_R, N)

    # negatives per anchor row
    neg_vals = jnp.where(eq, NEG_FILL, s)                            # (TILE_R, N)
    row_neg_max = jnp.max(neg_vals, axis=-1, keepdims=True)          # (TILE_R, 1)
    row_neg_sum = jnp.sum(jnp.exp(neg_vals - row_neg_max),
                          axis=-1, keepdims=True)                    # (TILE_R, 1)

    # -log( exp(s-m) / (exp(s-m) + sum_neg*exp(m_neg-m)) )
    #   == log(1 + sum_neg * exp(m_neg - s))       (|s| <= 1/0.07, cannot overflow)
    pair_loss = jnp.log(1.0 + row_neg_sum * jnp.exp(row_neg_max - s))  # (TILE_R, N)

    # sum over all same-label columns (includes the diagonal) ...
    eq_sum = jnp.sum(jnp.where(eq, pair_loss, 0.0),
                     axis=-1, keepdims=True)                         # (TILE_R, 1)
    # ... then subtract the analytically computed diagonal term per row
    diag_loss = jnp.log(1.0 + row_neg_sum *
                        jnp.exp(row_neg_max - sdiag_ref[...]))       # (TILE_R, 1)

    tile_total = jnp.sum(eq_sum - diag_loss)                         # scalar
    # lane-dense partial-sum output block (no masked partial stores)
    out_ref[...] = jnp.full(out_ref.shape, tile_total, out_ref.dtype)


def _vmem_cap_bytes():
    try:
        info = pltpu.get_tpu_info()
        cap = getattr(info, "vmem_capacity_bytes", None)
        if cap:
            return int(cap)
    except Exception:
        pass
    return 64 * 1024 * 1024   # smallest per-TensorCore VMEM across v5e/v6e/v7x


def supervised_contrastive_loss(features, labels, tile_r=None):
    """features: (N, D) float, labels: (N,) or (N,1) int. Returns scalar f32 loss."""
    n, d = features.shape
    if tile_r is None:
        tile_r = n
        for cand in (128, 64, 32, 16, 8):   # 128 default keeps per-step slabs small on v7x
            if n % cand == 0:
                tile_r = cand
                break
    assert n % tile_r == 0, "tile_r must divide the batch size"
    # TODO(synk): batch sizes not divisible by 8 would need a padded/masked tail tile.
    grid_r = n // tile_r

    # ---- cheap O(N*D^2) preprocessing in plain XLA (hoisted out of the kernel) ----
    x = features.astype(jnp.float32)
    row_norm = jnp.sqrt(jnp.sum(x * x, axis=1, keepdims=True))
    xn = x * (1.0 / jnp.maximum(row_norm, EPS_NORM))                      # (N, D)
    g = jax.lax.dot_general(xn, xn, (((0,), (0,)), ((), ())),
                            precision=jax.lax.Precision.HIGHEST)          # (D, D)
    h = jnp.dot(xn, g, precision=jax.lax.Precision.HIGHEST)               # (N, D)
    l2 = jnp.sum(h * xn, axis=1, keepdims=True)                           # ||L_i||^2, (N,1)
    inv_n = 1.0 / jnp.maximum(jnp.sqrt(l2), EPS_NORM)                     # (N, 1)
    sdiag = (l2 * inv_n * inv_n) * INV_NTXENT_TEMP                        # s_ii, (N, 1)
    xnt = xn.T                                                            # (D, N)

    if USE_BF16_MXU:
        h_in, xnt_in = h.astype(jnp.bfloat16), xnt.astype(jnp.bfloat16)
    else:
        h_in, xnt_in = h, xnt
    elem_in = 2 if USE_BF16_MXU else 4

    lab = jnp.reshape(labels, (n,)).astype(jnp.int32)
    lab_row = lab.reshape(n, 1)
    lab_col = lab.reshape(1, n)
    inv_col = inv_n.reshape(1, n)
    # positive-pair count computed once in the wrapper (drops per-step reduction)
    pos_count = jnp.sum((lab_row == lab_col).astype(jnp.float32)) - jnp.float32(n)

    # ---- VMEM budget: resident (D,N) operand + per-step slabs, capped per chip ----
    resident = 2 * (d * n * elem_in + 2 * n * 4)                 # Xn^T, invc, labc (x2 buf)
    per_tile = 2 * (tile_r * d * elem_in + 3 * tile_r * 4) + 2 * 8 * 128 * 4
    temps = 8 * tile_r * n * 4
    needed = resident + per_tile + temps + (2 << 20)
    vmem_limit = int(min(max(needed, 16 << 20), _vmem_cap_bytes() - (4 << 20)))

    cost = pl.CostEstimate(
        flops=2 * n * n * d + 12 * n * n,
        transcendentals=3 * n * n,
        bytes_accessed=int(n * d * elem_in + grid_r * (d * n * elem_in)
                           + 5 * n * 4 + grid_r * 8 * 128 * 4),
    )

    grid_spec = pltpu.PrefetchScalarGridSpec(
        num_scalar_prefetch=0,
        grid=(grid_r,),
        in_specs=[
            pl.BlockSpec((tile_r, d), lambda i: (i, 0)),   # H rows for this tile
            pl.BlockSpec((d, n), lambda i: (0, 0)),        # Xn^T (resident)
            pl.BlockSpec((tile_r, 1), lambda i: (i, 0)),   # inv-norm, anchor rows
            pl.BlockSpec((1, n), lambda i: (0, 0)),        # inv-norm, all columns
            pl.BlockSpec((tile_r, 1), lambda i: (i, 0)),   # analytic diag term s_ii
            pl.BlockSpec((tile_r, 1), lambda i: (i, 0)),   # labels, anchor rows
            pl.BlockSpec((1, n), lambda i: (0, 0)),        # labels, all columns
        ],
        out_specs=pl.BlockSpec((1, 8, 128), lambda i: (i, 0, 0)),
    )

    partial = pl.pallas_call(
        _supcon_kernel,
        out_shape=jax.ShapeDtypeStruct((grid_r, 8, 128), jnp.float32),
        grid_spec=grid_spec,
        compiler_params=pltpu.CompilerParams(
            dimension_semantics=("parallel",),   # independent per-tile partial sums
            vmem_limit_bytes=vmem_limit,
        ),
        cost_estimate=cost,
    )(h_in, xnt_in, inv_n, inv_col, sdiag, lab_row, lab_col)

    total = jnp.sum(partial[:, 0, 0])
    return total / jnp.maximum(pos_count, 1.0)   # MeanReducer; 0 if no positive pairs


def _reference_loss(features, labels):
    """Pure-JAX mirror of the original PyTorch formulation (f32, with /T and TINY)."""
    x = features.astype(jnp.float32)
    xn = x / jnp.maximum(
        jnp.sqrt(jnp.sum(x * x, axis=1, keepdims=True)), EPS_NORM)
    logits = jnp.dot(xn, xn.T, precision=jax.lax.Precision.HIGHEST) / TEMPERATURE
    zn = logits / jnp.maximum(
        jnp.sqrt(jnp.sum(logits * logits, axis=1, keepdims=True)), EPS_NORM)
    sim = jnp.dot(zn, zn.T, precision=jax.lax.Precision.HIGHEST) / NTXENT_TEMP

    lab = jnp.reshape(labels, (-1,))
    n = x.shape[0]
    eq = lab[:, None] == lab[None, :]
    diag = jnp.eye(n, dtype=bool)
    pos = jnp.logical_and(eq, jnp.logical_not(diag))
    neg = jnp.logical_not(eq)

    neg_vals = jnp.where(neg, sim, NEG_FILL)
    m = jnp.max(neg_vals, axis=1, keepdims=True)
    sneg = jnp.sum(jnp.exp(neg_vals - m), axis=1, keepdims=True)
    maxv = jnp.maximum(sim, m)
    num = jnp.exp(sim - maxv)
    den = num + sneg * jnp.exp(m - maxv)
    pair_loss = -jnp.log(num / den + TINY_F32)
    pos_f = pos.astype(jnp.float32)
    return jnp.sum(pair_loss * pos_f) / jnp.maximum(jnp.sum(pos_f), 1.0)


if __name__ == "__main__":
    key = jax.random.PRNGKey(0)
    kf, kl = jax.random.split(key)
    N, D = 16, 32
    features = jax.random.normal(kf, (N, D), dtype=jnp.float32)
    labels = jax.random.randint(kl, (N, 1), 0, 3, dtype=jnp.int32)  # 3 classes -> positives exist

    # tile_r=8 -> grid=(2,) so the tiled, per-tile-partial path is exercised.
    loss = supervised_contrastive_loss(features, labels, tile_r=8)
    jax.block_until_ready(loss)

    ref = _reference_loss(features, labels)
    assert jnp.allclose(loss, ref, rtol=2e-3, atol=2e-3), (float(loss), float(ref))
    print("KERNEL_OK")
</pallas_src>

<mosaic_0001>
module attributes {stable_mosaic.version = 11 : i64} {
  func.func @_supcon_kernel(%arg0: i32, %arg1: memref<8x32xf32, #tpu.memory_space<vmem>>, %arg2: memref<32x16xf32, #tpu.memory_space<vmem>>, %arg3: memref<8x1xf32, #tpu.memory_space<vmem>>, %arg4: memref<1x16xf32, #tpu.memory_space<vmem>>, %arg5: memref<8x1xf32, #tpu.memory_space<vmem>>, %arg6: memref<8x1xi32, #tpu.memory_space<vmem>>, %arg7: memref<1x16xi32, #tpu.memory_space<vmem>>, %arg8: memref<1x8x128xf32, #tpu.memory_space<vmem>>) attributes {dimension_semantics = [#tpu.dimension_semantics<parallel>], iteration_bounds = array<i64: 2>, scalar_prefetch = 0 : i64, scratch_operands = 0 : i64, tpu.core_type = #tpu.core_type<tc>, window_params = [{transform_indices = @transform_0, window_bounds = array<i64: 8, 32>}, {pipeline_mode = #tpu.pipeline_mode<synchronous>, transform_indices = @transform_1, window_bounds = array<i64: 32, 16>}, {transform_indices = @transform_2, window_bounds = array<i64: 8, 1>}, {pipeline_mode = #tpu.pipeline_mode<synchronous>, transform_indices = @transform_3, window_bounds = array<i64: 1, 16>}, {transform_indices = @transform_4, window_bounds = array<i64: 8, 1>}, {transform_indices = @transform_5, window_bounds = array<i64: 8, 1>}, {pipeline_mode = #tpu.pipeline_mode<synchronous>, transform_indices = @transform_6, window_bounds = array<i64: 1, 16>}, {transform_indices = @transform_7, window_bounds = array<i64: 1, 8, 128>}]} {
    %c0 = arith.constant 0 : index
    %c0_0 = arith.constant 0 : index
    %0 = vector.load %arg1[%c0, %c0_0] : memref<8x32xf32, #tpu.memory_space<vmem>>, vector<8x32xf32>
    %c0_1 = arith.constant 0 : index
    %c0_2 = arith.constant 0 : index
    %1 = vector.load %arg2[%c0_1, %c0_2] : memref<32x16xf32, #tpu.memory_space<vmem>>, vector<32x16xf32>
    %cst = arith.constant dense<0.000000e+00> : vector<8x16xf32>
    %2 = tpu.matmul %0, %1, %cst {dimension_numbers = #tpu.dot_dimension_numbers<[1], [0], [0], [1], [0, 0, 1, 1], [], []>} : vector<8x32xf32>, vector<32x16xf32>, vector<8x16xf32> -> vector<8x16xf32>
    %c0_3 = arith.constant 0 : index
    %c0_4 = arith.constant 0 : index
    %3 = vector.load %arg3[%c0_3, %c0_4] : memref<8x1xf32, #tpu.memory_space<vmem>>, vector<8x1xf32>
    %cst_5 = arith.constant 14.2857141 : f32
    %4 = vector.broadcast %cst_5 : f32 to vector<8x1xf32>
    %5 = arith.mulf %3, %4 : vector<8x1xf32>
    %6 = vector.broadcast %5 : vector<8x1xf32> to vector<8x16xf32>
    %7 = arith.mulf %2, %6 : vector<8x16xf32>
    %c0_6 = arith.constant 0 : index
    %c0_7 = arith.constant 0 : index
    %8 = vector.load %arg4[%c0_6, %c0_7] : memref<1x16xf32, #tpu.memory_space<vmem>>, vector<1x16xf32>
    %9 = vector.broadcast %8 : vector<1x16xf32> to vector<8x16xf32>
    %10 = arith.mulf %7, %9 : vector<8x16xf32>
    %c0_8 = arith.constant 0 : index
    %c0_9 = arith.constant 0 : index
    %11 = vector.load %arg6[%c0_8, %c0_9] : memref<8x1xi32, #tpu.memory_space<vmem>>, vector<8x1xi32>
    %c0_10 = arith.constant 0 : index
    %c0_11 = arith.constant 0 : index
    %12 = vector.load %arg7[%c0_10, %c0_11] : memref<1x16xi32, #tpu.memory_space<vmem>>, vector<1x16xi32>
    %13 = vector.broadcast %11 : vector<8x1xi32> to vector<8x16xi32>
    %14 = vector.broadcast %12 : vector<1x16xi32> to vector<8x16xi32>
    %15 = arith.cmpi eq, %13, %14 : vector<8x16xi32>
    %cst_12 = arith.constant -1.000000e+30 : f32
    %16 = vector.broadcast %cst_12 : f32 to vector<8x16xf32>
    %17 = arith.select %15, %16, %10 : vector<8x16xi1>, vector<8x16xf32>
    %cst_13 = arith.constant dense<0xFF800000> : vector<8xf32>
    %18 = vector.multi_reduction <maximumf>, %17, %cst_13 [1] : vector<8x16xf32> to vector<8xf32>
    %19 = vector.shape_cast %18 : vector<8xf32> to vector<8x1xf32>
    %20 = vector.broadcast %19 : vector<8x1xf32> to vector<8x16xf32>
    %21 = arith.subf %17, %20 : vector<8x16xf32>
    %22 = math.exp %21 : vector<8x16xf32>
    %cst_14 = arith.constant dense<0.000000e+00> : vector<8xf32>
    %23 = vector.multi_reduction <add>, %22, %cst_14 [1] : vector<8x16xf32> to vector<8xf32>
    %24 = vector.shape_cast %23 : vector<8xf32> to vector<8x1xf32>
    %25 = vector.broadcast %19 : vector<8x1xf32> to vector<8x16xf32>
    %26 = arith.subf %25, %10 : vector<8x16xf32>
    %27 = math.exp %26 : vector<8x16xf32>
    %28 = vector.broadcast %24 : vector<8x1xf32> to vector<8x16xf32>
    %29 = arith.mulf %28, %27 : vector<8x16xf32>
    %cst_15 = arith.constant 1.000000e+00 : f32
    %30 = vector.broadcast %cst_15 : f32 to vector<8x16xf32>
    %31 = arith.addf %30, %29 : vector<8x16xf32>
    %32 = math.log %31 : vector<8x16xf32>
    %cst_16 = arith.constant 0.000000e+00 : f32
    %33 = vector.broadcast %cst_16 : f32 to vector<8x16xf32>
    %34 = arith.select %15, %32, %33 : vector<8x16xi1>, vector<8x16xf32>
    %cst_17 = arith.constant dense<0.000000e+00> : vector<8xf32>
    %35 = vector.multi_reduction <add>, %34, %cst_17 [1] : vector<8x16xf32> to vector<8xf32>
    %36 = vector.shape_cast %35 : vector<8xf32> to vector<8x1xf32>
    %c0_18 = arith.constant 0 : index
    %c0_19 = arith.constant 0 : index
    %37 = vector.load %arg5[%c0_18, %c0_19] : memref<8x1xf32, #tpu.memory_space<vmem>>, vector<8x1xf32>
    %38 = arith.subf %19, %37 : vector<8x1xf32>
    %39 = math.exp %38 : vector<8x1xf32>
    %40 = arith.mulf %24, %39 : vector<8x1xf32>
    %cst_20 = arith.constant 1.000000e+00 : f32
    %41 = vector.broadcast %cst_20 : f32 to vector<8x1xf32>
    %42 = arith.addf %41, %40 : vector<8x1xf32>
    %43 = math.log %42 : vector<8x1xf32>
    %44 = arith.subf %36, %43 : vector<8x1xf32>
    %45 = vector.shape_cast %44 : vector<8x1xf32> to vector<1x8x1xf32>
    %cst_21 = arith.constant dense<0.000000e+00> : vector<1xf32>
    %46 = vector.multi_reduction <add>, %45, %cst_21 [1, 2] : vector<1x8x1xf32> to vector<1xf32>
    %47 = vector.shape_cast %46 : vector<1xf32> to vector<1x1x1xf32>
    %48 = vector.extract %47[0, 0, 0] : f32 from vector<1x1x1xf32>
    %49 = vector.broadcast %48 : f32 to vector<1x8x128xf32>
    %c0_22 = arith.constant 0 : index
    %c0_23 = arith.constant 0 : index
    %c0_24 = arith.constant 0 : index
    %50 = vector.load %arg8[%c0_22, %c0_23, %c0_24] : memref<1x8x128xf32, #tpu.memory_space<vmem>>, vector<1x8x128xf32>
    tpu.vector_store %arg8[%c0_22, %c0_23, %c0_24], %49 {strides = array<i32>} : memref<1x8x128xf32, #tpu.memory_space<vmem>>, vector<1x8x128xf32>,
    return
  }
  func.func @transform_0(%arg0: i32) -> (i32, i32) {
    %c0_i32 = arith.constant 0 : i32
    %c0_i32_0 = arith.constant 0 : i32
    return %arg0, %c0_i32 : i32, i32
  }
  func.func @transform_1(%arg0: i32) -> (i32, i32) {
    %c0_i32 = arith.constant 0 : i32
    %c0_i32_0 = arith.constant 0 : i32
    %c0_i32_1 = arith.constant 0 : i32
    return %c0_i32, %c0_i32_0 : i32, i32
  }
  func.func @transform_2(%arg0: i32) -> (i32, i32) {
    %c0_i32 = arith.constant 0 : i32
    %c0_i32_0 = arith.constant 0 : i32
    return %arg0, %c0_i32 : i32, i32
  }
  func.func @transform_3(%arg0: i32) -> (i32, i32) {
    %c0_i32 = arith.constant 0 : i32
    %c0_i32_0 = arith.constant 0 : i32
    %c0_i32_1 = arith.constant 0 : i32
    return %c0_i32, %c0_i32_0 : i32, i32
  }
  func.func @transform_4(%arg0: i32) -> (i32, i32) {
    %c0_i32 = arith.constant 0 : i32
    %c0_i32_0 = arith.constant 0 : i32
    return %arg0, %c0_i32 : i32, i32
  }
  func.func @transform_5(%arg0: i32) -> (i32, i32) {
    %c0_i32 = arith.constant 0 : i32
    %c0_i32_0 = arith.constant 0 : i32
    return %arg0, %c0_i32 : i32, i32
  }
  func.func @transform_6(%arg0: i32) -> (i32, i32) {
    %c0_i32 = arith.constant 0 : i32
    %c0_i32_0 = arith.constant 0 : i32
    %c0_i32_1 = arith.constant 0 : i32
    return %c0_i32, %c0_i32_0 : i32, i32
  }
  func.func @transform_7(%arg0: i32) -> (i32, i32, i32) {
    %c0_i32 = arith.constant 0 : i32
    %c0_i32_0 = arith.constant 0 : i32
    %c0_i32_1 = arith.constant 0 : i32
    return %arg0, %c0_i32, %c0_i32_0 : i32, i32, i32
  }
}

</mosaic_0001>

<llo_original>
// kernel: tpu_custom_call.1
$region0: #{tpu_custom_call.1}
  #allocation0 [shape = 'u32[]', space=smem, size = 0x4, offset = 0x4, fixed_abs, tag = 'smem constant byte address 0x4 - core index']
  #allocation1 [shape = 'u32[144,128]{1,0:T(1,128)}', space=vmem, size = 0x12000, scoped, tag = 'internal scratch']
  %s0 = inlined_call_operand.vmem [shape: f32[16,32], index: 0, kind: input, shape index: {}]
  %s1 = inlined_call_operand.vmem [shape: f32[32,16], index: 1, kind: input, shape index: {}]
  %s2 = inlined_call_operand.vmem [shape: f32[16,1], index: 2, kind: input, shape index: {}]
  %s3 = inlined_call_operand.vmem [shape: f32[1,16], index: 3, kind: input, shape index: {}]
  %s4 = inlined_call_operand.vmem [shape: f32[16,1], index: 4, kind: input, shape index: {}]
  %s5 = inlined_call_operand.vmem [shape: s32[16,1], index: 5, kind: input, shape index: {}]
  %s6 = inlined_call_operand.vmem [shape: s32[1,16], index: 6, kind: input, shape index: {}]
  %s7 = inlined_call_operand.hbm [shape: f32[2,8,128], index: 7, kind: output, shape index: {}]
  %s8 = sld [smem:[#allocation0]]
  $region61: #{tpu_custom_call.1} parent=0
    _
  %s10 = ssub.s32 1, %s8
  %s11 = scalar_select 0, %s10, %s8
  $region1: #{tpu_custom_call.1} parent=0
    #allocation2 [shape = 'u8[8192]{0}', space=vmem, size = 0x2000, scoped, tag = 'output window, operand 0']
    #allocation3 [shape = 's32[2]{0}', space=sflag, size = 0x8, scoped, tag = 'scoped memory for tpu_custom_call.1']
    %12 = vsyncpa [#allocation3], 0
    %s13 = scalar_lea.sflag [#allocation3], 1
    %14 = vsyncpa %s13, 0
    loop: start=0, step=1, limit=4
    $region2: #{tpu_custom_call.1} parent=1 // loop_pre_header
      _
    $region3: #{tpu_custom_call.1} parent=1 // loop_header
      %s16 = sphi 0, %s20
      %p17 = scmp.ge.s32.totalorder %s16, 4
      %s26 = sphi 0, %s28
      %s29 = sphi 0, %s26
      %s30 = sphi 0, %s29
      %s46 = sphi 0, %s30
      %s50 = sphi 0, %s50
      %s52 = sphi 0, %s50
      %s53 = sphi 0, %s52
      %s67 = sphi 0, %s53
      %s73 = sphi 0, %s75
      %s76 = sphi 0, %s73
      %s77 = sphi 0, %s76
      %s93 = sphi 0, %s77
      %s97 = sphi 0, %s97
      %s99 = sphi 0, %s97
      %s100 = sphi 0, %s99
      %s114 = sphi 0, %s100
      %s120 = sphi 0, %s122
      %s123 = sphi 0, %s120
      %s124 = sphi 0, %s123
      %s140 = sphi 0, %s124
      %s146 = sphi 0, %s148
      %s149 = sphi 0, %s146
      %s150 = sphi 0, %s149
      %s166 = sphi 0, %s150
      %s170 = sphi 0, %s170
      %s172 = sphi 0, %s170
      %s173 = sphi 0, %s172
      %s187 = sphi 0, %s173
      %s193 = sphi 0, %s195
      %s196 = sphi 0, %s193
      %s197 = sphi 0, %s196
      %s213 = sphi 0, %s197
    $region4: #{tpu_custom_call.1} parent=1 // loop_header_branch
      %19 = sbr.rel (%p17) target = $region8
    $region5: #{tpu_custom_call.1} parent=1 // loop_body
      %s21 = ssub.s32 %s16, 1
      %s22 = ssub.s32 %s16, 2
      %s23 = sadd.s32 %s16, 1
      %s24 = ssub.s32 %s16, %s23
      %p25 = scmp.eq.s32.totalorder %s24, 0
      %s27 = sadd.s32 %s26, 1
      %s28 = scalar_select %p25, %s26, %s27
      %p31 = pneg %p25
      %p32 = scmp.eq.s32.totalorder %s16, 1
      %p33 = por %p31, %p32
      %p34 = scmp.ne.s32.totalorder %s26, %s29
      %p35 = scmp.eq.s32.totalorder %s16, 0
      %p36 = por %p34, %p35
      %p37 = scmp.ne.s32.totalorder %s26, %s29
      %p38 = scmp.eq.s32.totalorder %s21, 1
      %p39 = por %p37, %p38
      %p40 = scmp.ne.s32.totalorder %s29, %s30
      %p41 = scmp.eq.s32.totalorder %s21, 0
      %p42 = por %p40, %p41
      %p43 = scmp.ne.s32.totalorder %s29, %s30
      %p44 = scmp.eq.s32.totalorder %s22, 1
      %p45 = por %p43, %p44
      %p47 = scmp.ne.s32.totalorder %s30, %s46
      %p48 = scmp.eq.s32.totalorder %s22, 0
      %p49 = por %p47, %p48
      %s51 = sadd.s32 %s50, 1
      %p54 = scmp.eq.s32.totalorder %s16, 1
      %p55 = scmp.ne.s32.totalorder %s50, %s52
      %p56 = scmp.eq.s32.totalorder %s16, 0
      %p57 = por %p55, %p56
      %p58 = scmp.ne.s32.totalorder %s50, %s52
      %p59 = scmp.eq.s32.totalorder %s21, 1
      %p60 = por %p58, %p59
      %p61 = scmp.ne.s32.totalorder %s52, %s53
      %p62 = scmp.eq.s32.totalorder %s21, 0
      %p63 = por %p61, %p62
      %p64 = scmp.ne.s32.totalorder %s52, %s53
      %p65 = scmp.eq.s32.totalorder %s22, 1
      %p66 = por %p64, %p65
      %p68 = scmp.ne.s32.totalorder %s53, %s67
      %p69 = scmp.eq.s32.totalorder %s22, 0
      %p70 = por %p68, %p69
      %s71 = ssub.s32 %s16, %s23
      %p72 = scmp.eq.s32.totalorder %s71, 0
      %s74 = sadd.s32 %s73, 1
      %s75 = scalar_select %p72, %s73, %s74
      %p78 = pneg %p72
      %p79 = scmp.eq.s32.totalorder %s16, 1
      %p80 = por %p78, %p79
      %p81 = scmp.ne.s32.totalorder %s73, %s76
      %p82 = scmp.eq.s32.totalorder %s16, 0
      %p83 = por %p81, %p82
      %p84 = scmp.ne.s32.totalorder %s73, %s76
      %p85 = scmp.eq.s32.totalorder %s21, 1
      %p86 = por %p84, %p85
      %p87 = scmp.ne.s32.totalorder %s76, %s77
      %p88 = scmp.eq.s32.totalorder %s21, 0
      %p89 = por %p87, %p88
      %p90 = scmp.ne.s32.totalorder %s76, %s77
      %p91 = scmp.eq.s32.totalorder %s22, 1
      %p92 = por %p90, %p91
      %p94 = scmp.ne.s32.totalorder %s77, %s93
      %p95 = scmp.eq.s32.totalorder %s22, 0
      %p96 = por %p94, %p95
      %s98 = sadd.s32 %s97, 1
      %p101 = scmp.eq.s32.totalorder %s16, 1
      %p102 = scmp.ne.s32.totalorder %s97, %s99
      %p103 = scmp.eq.s32.totalorder %s16, 0
      %p104 = por %p102, %p103
      %p105 = scmp.ne.s32.totalorder %s97, %s99
      %p106 = scmp.eq.s32.totalorder %s21, 1
      %p107 = por %p105, %p106
      %p108 = scmp.ne.s32.totalorder %s99, %s100
      %p109 = scmp.eq.s32.totalorder %s21, 0
      %p110 = por %p108, %p109
      %p111 = scmp.ne.s32.totalorder %s99, %s100
      %p112 = scmp.eq.s32.totalorder %s22, 1
      %p113 = por %p111, %p112
      %p115 = scmp.ne.s32.totalorder %s100, %s114
      %p116 = scmp.eq.s32.totalorder %s22, 0
      %p117 = por %p115, %p116
      %s118 = ssub.s32 %s16, %s23
      %p119 = scmp.eq.s32.totalorder %s118, 0
      %s121 = sadd.s32 %s120, 1
      %s122 = scalar_select %p119, %s120, %s121
      %p125 = pneg %p119
      %p126 = scmp.eq.s32.totalorder %s16, 1
      %p127 = por %p125, %p126
      %p128 = scmp.ne.s32.totalorder %s120, %s123
      %p129 = scmp.eq.s32.totalorder %s16, 0
      %p130 = por %p128, %p129
      %p131 = scmp.ne.s32.totalorder %s120, %s123
      %p132 = scmp.eq.s32.totalorder %s21, 1
      %p133 = por %p131, %p132
      %p134 = scmp.ne.s32.totalorder %s123, %s124
      %p135 = scmp.eq.s32.totalorder %s21, 0
      %p136 = por %p134, %p135
      %p137 = scmp.ne.s32.totalorder %s123, %s124
      %p138 = scmp.eq.s32.totalorder %s22, 1
      %p139 = por %p137, %p138
      %p141 = scmp.ne.s32.totalorder %s124, %s140
      %p142 = scmp.eq.s32.totalorder %s22, 0
      %p143 = por %p141, %p142
      %s144 = ssub.s32 %s16, %s23
      %p145 = scmp.eq.s32.totalorder %s144, 0
      %s147 = sadd.s32 %s146, 1
      %s148 = scalar_select %p145, %s146, %s147
      %p151 = pneg %p145
      %p152 = scmp.eq.s32.totalorder %s16, 1
      %p153 = por %p151, %p152
      %p154 = scmp.ne.s32.totalorder %s146, %s149
      %p155 = scmp.eq.s32.totalorder %s16, 0
      %p156 = por %p154, %p155
      %p157 = scmp.ne.s32.totalorder %s146, %s149
      %p158 = scmp.eq.s32.totalorder %s21, 1
      %p159 = por %p157, %p158
      %p160 = scmp.ne.s32.totalorder %s149, %s150
      %p161 = scmp.eq.s32.totalorder %s21, 0
      %p162 = por %p160, %p161
      %p163 = scmp.ne.s32.totalorder %s149, %s150
      %p164 = scmp.eq.s32.totalorder %s22, 1
      %p165 = por %p163, %p164
      %p167 = scmp.ne.s32.totalorder %s150, %s166
      %p168 = scmp.eq.s32.totalorder %s22, 0
      %p169 = por %p167, %p168
      %s171 = sadd.s32 %s170, 1
      %p174 = scmp.eq.s32.totalorder %s16, 1
      %p175 = scmp.ne.s32.totalorder %s170, %s172
      %p176 = scmp.eq.s32.totalorder %s16, 0
      %p177 = por %p175, %p176
      %p178 = scmp.ne.s32.totalorder %s170, %s172
      %p179 = scmp.eq.s32.totalorder %s21, 1
      %p180 = por %p178, %p179
      %p181 = scmp.ne.s32.totalorder %s172, %s173
      %p182 = scmp.eq.s32.totalorder %s21, 0
      %p183 = por %p181, %p182
      %p184 = scmp.ne.s32.totalorder %s172, %s173
      %p185 = scmp.eq.s32.totalorder %s22, 1
      %p186 = por %p184, %p185
      %p188 = scmp.ne.s32.totalorder %s173, %s187
      %p189 = scmp.eq.s32.totalorder %s22, 0
      %p190 = por %p188, %p189
      %s191 = ssub.s32 %s16, %s23
      %p192 = scmp.eq.s32.totalorder %s191, 0
      %s194 = sadd.s32 %s193, 1
      %s195 = scalar_select %p192, %s193, %s194
      %p198 = pneg %p192
      %p199 = scmp.eq.s32.totalorder %s16, 1
      %p200 = por %p198, %p199
      %p201 = scmp.ne.s32.totalorder %s193, %s196
      %p202 = scmp.eq.s32.totalorder %s16, 0
      %p203 = por %p201, %p202
      %p204 = scmp.ne.s32.totalorder %s193, %s196
      %p205 = scmp.eq.s32.totalorder %s21, 1
      %p206 = por %p204, %p205
      %p207 = scmp.ne.s32.totalorder %s196, %s197
      %p208 = scmp.eq.s32.totalorder %s21, 0
      %p209 = por %p207, %p208
      %p210 = scmp.ne.s32.totalorder %s196, %s197
      %p211 = scmp.eq.s32.totalorder %s22, 1
      %p212 = por %p210, %p211
      %p214 = scmp.ne.s32.totalorder %s197, %s213
      %p215 = scmp.eq.s32.totalorder %s22, 0
      %p216 = por %p214, %p215
      %p217 = scmp.le.s32.totalorder 1, %s16
      %p218 = scmp.lt.s32.totalorder %s16, 3
      %p219 = pnand %p217, %p218
      %p220 = pneg %p219
      // Predicated region
      $region9: #{tpu_custom_call.1} parent=5 // pred_check
        _
      $region10: #{tpu_custom_call.1} parent=5 // pred_check_branch
        %222 = sbr.rel (%p219) target = $region12
      $region11: #{tpu_custom_call.1} parent=5 // pred_region
        %s223 = ssub.s32 %s16, 1
        // Predicated region
        $region13: #{tpu_custom_call.1} parent=11 // pred_check
          %p224 = pneg %p63
        $region14: #{tpu_custom_call.1} parent=11 // pred_check_branch
          %226 = sbr.rel (%p224) target = $region16
        $region15: #{tpu_custom_call.1} parent=11 // pred_region
          _
        $region16: #{tpu_custom_call.1} parent=11 // pred_fallthru
          _
        // Predicated region
        $region17: #{tpu_custom_call.1} parent=11 // pred_check
          %p227 = pneg %p110
        $region18: #{tpu_custom_call.1} parent=11 // pred_check_branch
          %229 = sbr.rel (%p227) target = $region20
        $region19: #{tpu_custom_call.1} parent=11 // pred_region
          _
        $region20: #{tpu_custom_call.1} parent=11 // pred_fallthru
          _
        // Predicated region
        $region21: #{tpu_custom_call.1} parent=11 // pred_check
          %p230 = pneg %p183
        $region22: #{tpu_custom_call.1} parent=11 // pred_check_branch
          %232 = sbr.rel (%p230) target = $region24
        $region23: #{tpu_custom_call.1} parent=11 // pred_region
          _
        $region24: #{tpu_custom_call.1} parent=11 // pred_fallthru
          _
      $region12: #{tpu_custom_call.1} parent=5 // pred_fallthru
        _
      %p233 = scmp.lt.s32.totalorder %s16, 2
      // Predicated region
      $region25: #{tpu_custom_call.1} parent=5 // pred_check
        %p234 = pneg %p233
      $region26: #{tpu_custom_call.1} parent=5 // pred_check_branch
        %236 = sbr.rel (%p234) target = $region28
      $region27: #{tpu_custom_call.1} parent=5 // pred_region
        // Predicated region
        $region29: #{tpu_custom_call.1} parent=27 // pred_check
          %p237 = pneg %p36
        $region30: #{tpu_custom_call.1} parent=27 // pred_check_branch
          %239 = sbr.rel (%p237) target = $region32
        $region31: #{tpu_custom_call.1} parent=27 // pred_region
          %p240 = scmp.lt.s32.totalorder %s16, 1
          %s241 = scalar_select %p240, %s16, 1
          %s242 = smul.addr %s241, 8
          %s243 = scalar_lea.vmem %s0, %s242
        $region32: #{tpu_custom_call.1} parent=27 // pred_fallthru
          _
        // Predicated region
        $region33: #{tpu_custom_call.1} parent=27 // pred_check
          %p244 = pneg %p83
        $region34: #{tpu_custom_call.1} parent=27 // pred_check_branch
          %246 = sbr.rel (%p244) target = $region36
        $region35: #{tpu_custom_call.1} parent=27 // pred_region
          %p247 = scmp.lt.s32.totalorder %s16, 1
          %s248 = scalar_select %p247, %s16, 1
          %s249 = smul.addr %s248, 8
          %s250 = scalar_lea.vmem %s2, %s249
        $region36: #{tpu_custom_call.1} parent=27 // pred_fallthru
          _
        // Predicated region
        $region37: #{tpu_custom_call.1} parent=27 // pred_check
          %p251 = pneg %p130
        $region38: #{tpu_custom_call.1} parent=27 // pred_check_branch
          %253 = sbr.rel (%p251) target = $region40
        $region39: #{tpu_custom_call.1} parent=27 // pred_region
          %p254 = scmp.lt.s32.totalorder %s16, 1
          %s255 = scalar_select %p254, %s16, 1
          %s256 = smul.addr %s255, 8
          %s257 = scalar_lea.vmem %s4, %s256
        $region40: #{tpu_custom_call.1} parent=27 // pred_fallthru
          _
        // Predicated region
        $region41: #{tpu_custom_call.1} parent=27 // pred_check
          %p258 = pneg %p156
        $region42: #{tpu_custom_call.1} parent=27 // pred_check_branch
          %260 = sbr.rel (%p258) target = $region44
        $region43: #{tpu_custom_call.1} parent=27 // pred_region
          %p261 = scmp.lt.s32.totalorder %s16, 1
          %s262 = scalar_select %p261, %s16, 1
          %s263 = smul.addr %s262, 8
          %s264 = scalar_lea.vmem %s5, %s263
        $region44: #{tpu_custom_call.1} parent=27 // pred_fallthru
          _
      $region28: #{tpu_custom_call.1} parent=5 // pred_fallthru
        _
      %p265 = scmp.le.s32.totalorder 1, %s16
      %p266 = scmp.lt.s32.totalorder %s16, 3
      %p267 = pnand %p265, %p266
      %p268 = pneg %p267
      // Predicated region
      $region45: #{tpu_custom_call.1} parent=5 // pred_check
        _
      $region46: #{tpu_custom_call.1} parent=5 // pred_check_branch
        %270 = sbr.rel (%p267) target = $region48
      $region47: #{tpu_custom_call.1} parent=5 // pred_region
        %s271 = ssub.s32 %s16, 1
        %p272 = scmp.lt.s32.totalorder %s21, 1
        %s273 = scalar_select %p272, %s21, 1
        %s274 = smul.addr %s273, 8
        %s275 = scalar_lea.vmem %s0, %s274
        %p276 = pneg %p42
        %p277 = pneg %p39
        %p278 = pneg %p63
        %p279 = pneg %p60
        %p280 = scmp.lt.s32.totalorder %s21, 1
        %s281 = scalar_select %p280, %s21, 1
        %s282 = smul.addr %s281, 8
        %s283 = scalar_lea.vmem %s2, %s282
        %p284 = pneg %p89
        %p285 = pneg %p86
        %p286 = pneg %p110
        %p287 = pneg %p107
        %p288 = scmp.lt.s32.totalorder %s21, 1
        %s289 = scalar_select %p288, %s21, 1
        %s290 = smul.addr %s289, 8
        %s291 = scalar_lea.vmem %s4, %s290
        %p292 = pneg %p136
        %p293 = pneg %p133
        %p294 = scmp.lt.s32.totalorder %s21, 1
        %s295 = scalar_select %p294, %s21, 1
        %s296 = smul.addr %s295, 8
        %s297 = scalar_lea.vmem %s5, %s296
        %p298 = pneg %p162
        %p299 = pneg %p159
        %p300 = pneg %p183
        %p301 = pneg %p180
        %p302 = pneg %p209
        %p303 = pneg %p206
        %s304 = sand.u32 %s196, 1
        %s305 = scalar_lea.sflag [#allocation3], %s304
        %s306 = sand.u32 %s196, 1
        %s307 = smul.addr %s306, 8
        %s308 = scalar_lea.vmem [#allocation2], %s307
        %p309 = scmp.lt.s32.totalorder %s21, 1
        %s310 = scalar_select %p309, %s21, 1
        %s311 = smul.addr %s310, 8
        %s312 = scalar_lea.vmem %s0, %s311
        %p313 = scmp.lt.s32.totalorder %s21, 1
        %s314 = scalar_select %p313, %s21, 1
        %s315 = smul.addr %s314, 8
        %s316 = scalar_lea.vmem %s2, %s315
        %p317 = scmp.lt.s32.totalorder %s21, 1
        %s318 = scalar_select %p317, %s21, 1
        %s319 = smul.addr %s318, 8
        %s320 = scalar_lea.vmem %s4, %s319
        %p321 = scmp.lt.s32.totalorder %s21, 1
        %s322 = scalar_select %p321, %s21, 1
        %s323 = smul.addr %s322, 8
        %s324 = scalar_lea.vmem %s5, %s323
        %v325 = vld [vmem:[%s312] sm:$0xff]
        %v326 = vld [vmem:[%s1] sm:$0xff]
        %v327 = vld [vmem:[%s1 + $0x8] sm:$0xff]
        %v328 = vld [vmem:[%s1 + $0x10] sm:$0xff]
        %v329 = vld [vmem:[%s1 + $0x18] sm:$0xff]
        %vm330 = vcmask 261120
        %v332 = vsel %vm330, %v325, 0
        %334 = vmatprep.subr.mxu0 0.0
        %335 = vmatpush1.msra.mxu0 %v326
        %336 = vmatprep.subr.mxu0 0.0
        %337 = vmatpush1.msra.mxu0 %v327
        %338 = vmatprep.subr.mxu0 0.0
        %339 = vmatpush1.msra.mxu0 %v328
        %340 = vmatprep.subr.mxu0 0.0
        %341 = vmatpush1.msra.mxu0 %v329
        %342 = vmatprep.subr.mxu0 0.0
        %343 = vmatpush1.msra.mxu0 0.0
        %344 = vmatprep.subr.mxu0 0.0
        %345 = vmatpush1.msra.mxu0 0.0
        %346 = vmatprep.subr.mxu0 0.0
        %347 = vmatpush1.msra.mxu0 0.0
        %348 = vmatprep.subr.mxu0 0.0
        %349 = vmatpush1.msra.mxu0 0.0
        %350 = vmatprep.subr.mxu0 0.0
        %351 = vmatpush1.msra.mxu0 0.0
        %352 = vmatprep.subr.mxu0 0.0
        %353 = vmatpush1.msra.mxu0 0.0
        %354 = vmatprep.subr.mxu0 0.0
        %355 = vmatpush1.msra.mxu0 0.0
        %356 = vmatprep.subr.mxu0 0.0
        %357 = vmatpush1.msra.mxu0 0.0
        %358 = vmatprep.subr.mxu0 0.0
        %359 = vmatpush1.msra.mxu0 0.0
        %360 = vmatprep.subr.mxu0 0.0
        %361 = vmatpush1.msra.mxu0 0.0
        %362 = vmatprep.subr.mxu0 0.0
        %363 = vmatpush1.msra.mxu0 0.0
        %364 = vmatprep.subr.mxu0 0.0
        %365 = vmatpush1.msra.mxu0 0.0
        %366 = vmatprep.subr.mxu0 0.0
        %367 = vmatpush1.msra.mxu0 0.0
        %368 = vmatprep.subr.mxu0 0.0
        %369 = vmatpush1.msra.mxu0 0.0
        %370 = vmatprep.subr.mxu0 0.0
        %371 = vmatpush1.msra.mxu0 0.0
        %372 = vmatprep.subr.mxu0 0.0
        %373 = vmatpush1.msra.mxu0 0.0
        %374 = vmatprep.subr.mxu0 0.0
        %375 = vmatpush1.msra.mxu0 0.0
        %376 = vmatprep.subr.mxu0 0.0
        %377 = vmatpush1.msra.mxu0 0.0
        %378 = vmatprep.subr.mxu0 0.0
        %379 = vmatpush1.msra.mxu0 0.0
        %380 = vmatprep.subr.mxu0 0.0
        %381 = vmatpush1.msra.mxu0 0.0
        %382 = vmatprep.subr.mxu0 0.0
        %383 = vmatpush1.msra.mxu0 0.0
        %384 = vmatprep.subr.mxu0 0.0
        %385 = vmatpush1.msra.mxu0 0.0
        %386 = vmatprep.subr.mxu0 0.0
        %387 = vmatpush1.msra.mxu0 0.0
        %388 = vmatprep.subr.mxu0 0.0
        %389 = vmatpush1.msra.mxu0 0.0
        %390 = vmatprep.subr.mxu0 0.0
        %391 = vmatpush1.msra.mxu0 0.0
        %392 = vmatprep.subr.mxu0 0.0
        %393 = vmatpush1.msra.mxu0 0.0
        %394 = vmatprep.subr.mxu0 0.0
        %395 = vmatpush1.msra.mxu0 0.0
        %396 = vmatprep.subr.mxu0 0.0
        %397 = vmatpush1.msra.mxu0 0.0
        %398 = vmatprep.mubr.f32.mxu0 0.0
        %399 = vmatmul.mubr.f32.gmra.mrb[0].mxu0 %v332
        %v400 = vpop.f32.mrb[0].mxu0
        %v401 = vadd.f32 0.0, %v400
        %v402 = vpop.f32.mrb[0].mxu0
        %403 = vdwg.mxu0
        %v404 = vld [vmem:[%s316] sm:$0xff]
        %v405 = vmul.f32 %v404, 14.285714
        %407 = vset.pattern.permute.xlu0 0
        %408 = vperm.xlu0 %407, %v405
        %v409 = vpop.permute.xlu0 %408
        %v411 = vmul.f32 %v401, %v409
        %v412 = vld [vmem:[%s3] sm:$0x1]
        %v414 = vlaneseq
        %v415 = vshrl.u32 %v414, 7
        %v416 = vsub.s32 0, %v415
        %v417 = vrot.slane %v412, %v416
        %v419 = vmul.f32 %v411, %v417
        %v420 = vld [vmem:[%s324] sm:$0xff]
        %v421 = vld [vmem:[%s6] sm:$0x1]
        %422 = vset.pattern.permute.xlu0 0
        %423 = vperm.xlu0 %422, %v420
        %v424 = vpop.permute.xlu0 %423
        %v425 = vlaneseq
        %v426 = vshrl.u32 %v425, 7
        %v427 = vsub.s32 0, %v426
        %v428 = vrot.slane %v421, %v427
        %vm429 = vcmp.eq.s32.totalorder %v424, %v428
        %v430 = vsel %vm429, -1e+30, %v419
        %vm431 = vcmask 130048
        %v432 = vsel %vm431, %v430, -inf
        %433 = vmax.xlane.f32.xlu0 %v432
        %v434 = vpop.xlane.xlu0 %433
        %v435 = vsub.f32 %v430, %v434
        %v436 = vmul.f32 %v435, 1.442695
        %v437 = vpow.pop %v436
        %v438 = vsel %vm431, %v437, 0.0
        %439 = vadd.xlane.f32.xlu0 %v438
        %v440 = vpop.xlane.xlu0 %439
        %v441 = vsub.f32 %v434, %v419
        %v442 = vmul.f32 %v441, 1.442695
        %v443 = vpow.pop %v442
        %v444 = vmul.f32 %v440, %v443
        %v445 = vadd.f32 %v444, 1.0
        %v446 = vlog2.pop %v445
        %v447 = vmul.f32 %v446, 0.6931472
        %v448 = vsel %vm429, %v447, 0.0
        %v449 = vsel %vm431, %v448, 0.0
        %450 = vadd.xlane.f32.xlu0 %v449
        %v451 = vpop.xlane.xlu0 %450
        %v452 = vld [vmem:[%s320] sm:$0xff]
        %v453 = vsub.f32 %v434, %v452
        %v454 = vmul.f32 %v453, 1.442695
        %v455 = vpow.pop %v454
        %v456 = vmul.f32 %v440, %v455
        %v457 = vadd.f32 %v456, 1.0
        %v458 = vlog2.pop %v457
        %v459 = vmul.f32 %v458, 0.6931472
        %v460 = vsub.f32 %v451, %v459
        %vm461 = vcmask 7168
        %v462 = vsel %vm461, %v460, 0.0
        %463 = vadd.xlane.f32.xlu0 %v462
        %v464 = vpop.xlane.xlu0 %463
        %v465 = vrot.slane %v464, 4
        %v466 = vadd.f32 %v464, %v465
        %v467 = vrot.slane %v466, 2
        %v468 = vadd.f32 %v466, %v467
        %v469 = vrot.slane %v468, 1
        %v470 = vadd.f32 %v468, %v469
        %s471 = vtos %v470
        %v472 = vstv %s471
        %473 = vst [vmem:[%s308] sm:$0xff] %v472
        %s474 = sand.u32 %s196, 1
        %s475 = scalar_lea.sflag [#allocation3], %s474
        %s476 = sand.u32 %s196, 1
        %s477 = smul.addr %s476, 8
        %s478 = scalar_lea.vmem [#allocation2], %s477
        // Predicated region
        $region49: #{tpu_custom_call.1} parent=47 // pred_check
          %p479 = pneg %p206
        $region50: #{tpu_custom_call.1} parent=47 // pred_check_branch
          %481 = sbr.rel (%p479) target = $region52
        $region51: #{tpu_custom_call.1} parent=47 // pred_region
          %s483 = ssub.s32 128, 128
          %484 = vsyncadd %s475, %s483
          %s485 = smul.addr %s21, 128
          %s486 = scalar_lea.hbm %s7, %s485
          %s488 = sshll.u32 %s478, 4
          %s489 = int_to_ptr.vmem [resolvable:$true] %s488
          %491 = dma.vmem_to_hbm [thread:$0]  %s489, 128, %s486, %s475
        $region52: #{tpu_custom_call.1} parent=47 // pred_fallthru
          _
      $region48: #{tpu_custom_call.1} parent=5 // pred_fallthru
        _
      %p492 = scmp.le.s32.totalorder 2, %s16
      // Predicated region
      $region53: #{tpu_custom_call.1} parent=5 // pred_check
        %p493 = pneg %p492
      $region54: #{tpu_custom_call.1} parent=5 // pred_check_branch
        %495 = sbr.rel (%p493) target = $region56
      $region55: #{tpu_custom_call.1} parent=5 // pred_region
        %s496 = ssub.s32 %s16, 2
        // Predicated region
        $region57: #{tpu_custom_call.1} parent=55 // pred_check
          %p497 = pneg %p212
        $region58: #{tpu_custom_call.1} parent=55 // pred_check_branch
          %499 = sbr.rel (%p497) target = $region60
        $region59: #{tpu_custom_call.1} parent=55 // pred_region
          %s500 = sand.u32 %s197, 1
          %s501 = scalar_lea.sflag [#allocation3], %s500
          %s502 = sand.u32 %s197, 1
          %s503 = smul.addr %s502, 8
          %s504 = scalar_lea.vmem [#allocation2], %s503
          %505 = dma.done %s501, 128
        $region60: #{tpu_custom_call.1} parent=55 // pred_fallthru
          _
      $region56: #{tpu_custom_call.1} parent=5 // pred_fallthru
        _
    $region6: #{tpu_custom_call.1} parent=1 // loop_footer
      %s20 = sadd.s32 1, %s16
    $region7: #{tpu_custom_call.1} parent=1 // loop_footer_branch
      %15 = sbr.rel target = $region3
    $region8: #{tpu_custom_call.1} parent=1 // loop_exit
      _
    %506 = vsyncpa [#allocation3], 1
    %s507 = scalar_lea.sflag [#allocation3], 1
    %508 = vsyncpa %s507, 1

</llo_original>
